<compile_context>
chip_gen: v6e
topology: v6e:2x2x1
jax: 0.10.0
libtpu: 0.0.40
codegen_flags: <defaults>
</compile_context>

<pallas_src>
import functools

import jax
import jax.numpy as jnp
from jax.experimental import pallas as pl
from jax.experimental.pallas import tpu as pltpu


# --------------------------------------------------------------------------
# pltpu.roll direction probe (one tiny kernel, cached) so the +-1 column
# shift inside the conv kernel is provably in the right direction.
# --------------------------------------------------------------------------

_ROLL_SIGN = None


def _roll_sign():
    global _ROLL_SIGN
    if _ROLL_SIGN is None:
        def probe(x_ref, o_ref):
            o_ref[...] = pltpu.roll(x_ref[...], 1, 0)

        x = jnp.arange(8 * 128, dtype=jnp.float32).reshape(8, 128)
        y = pl.pallas_call(
            probe, out_shape=jax.ShapeDtypeStruct((8, 128), jnp.float32))(x)
        _ROLL_SIGN = 1 if bool(jnp.all(y == jnp.roll(x, 1, axis=0))) else -1
    return _ROLL_SIGN


# --------------------------------------------------------------------------
# Implicit-GEMM 3x3 conv (stride 1, pad 1), BN folded, optional fused ReLU
# and optional fused GAU combine: relu(up + conv(low) * gp).
#
# Input layout per sample:
#   xp[b] = [8 zero rows] + flatten(pad_height(x[b], 1)) + [8 zero rows]
# so the input row for output flat position p and tap (ky, kx) is
#   xp[b, 8 + p + ky*W + (kx-1)]
# and every pl.ds issued by the kernel starts at a multiple of 8.  The width
# wrap-around of the kx-1 = -1/+1 taps is masked with an iota column mask.
# --------------------------------------------------------------------------

def _conv3x3_kernel(*refs, width, cin, tm, relu, fuse_gau, roll_sign):
    if fuse_gau:
        x_ref, w_ref, b_ref, up_ref, gp_ref, o_ref, xcat_ref = refs
    else:
        x_ref, w_ref, b_ref, o_ref, xcat_ref = refs

    lext = tm + 16
    p0 = pl.program_id(1) * tm
    # column (within an image row) of every output row of this block
    col = (jax.lax.broadcasted_iota(jnp.int32, (tm, 1), 0) + p0) % width
    left_edge = col == 0                 # kx = 0 tap invalid here
    right_edge = col == (width - 1)      # kx = 2 tap invalid here

    for ky in range(3):
        start = pl.multiple_of(p0 + ky * width, 8)
        v = x_ref[0, pl.ds(start, lext), :].astype(jnp.float32)  # (tm+16, cin)
        for kx in range(3):
            dx = kx - 1
            if dx == 0:
                xs = v[8:8 + tm, :]
            else:
                shift = (-dx * roll_sign) % lext
                xs = pltpu.roll(v, shift, 0)[8:8 + tm, :]
                xs = jnp.where(left_edge if dx < 0 else right_edge, 0.0, xs)
            t = ky * 3 + kx
            xcat_ref[:, t * cin:(t + 1) * cin] = xs.astype(jnp.bfloat16)

    y = jnp.dot(xcat_ref[...], w_ref[...], preferred_element_type=jnp.float32)
    y = y + b_ref[...]
    if fuse_gau:
        y = y * gp_ref[0].astype(jnp.float32) + up_ref[0].astype(jnp.float32)
    if relu:
        y = jnp.maximum(y, 0.0)
    o_ref[0] = y.astype(o_ref.dtype)


def _conv_tiles(m, cin, cout):
    """Pick (tm, tn): big blocks, xcat scratch <= ~6MB, >= 2 grid blocks."""
    if cout <= 128:
        tn = cout
    elif cout % 256 == 0:
        tn = 256
    else:
        tn = 128
    cap = min(m, 8192, max(64, (6 << 20) // (9 * cin * 2)))
    tm = m
    while tm > cap:
        tm //= 2
    if (m // tm) * (cout // tn) == 1:          # keep both v7x cores busy
        if tn >= 256:
            tn //= 2
        elif tm >= 16:
            tm //= 2
    return tm, tn


def conv3x3_px(x, lw, relu, fuse_up=None, fuse_gp=None):
    """3x3 stride-1 pad-1 conv (BN folded into lw). Optional fused GAU combine."""
    n, h, w, c = x.shape
    cout = lw["w"].shape[1]
    assert lw["w"].shape[0] == 9 * c
    m = h * w
    tm, tn = _conv_tiles(m, c, cout)
    fuse = fuse_up is not None
    sign = _roll_sign()

    # height-padded, flattened, 8-row guarded input: (n, (h+2)*w + 16, c)
    xp = jnp.pad(x.astype(jnp.bfloat16), ((0, 0), (1, 1), (0, 0), (0, 0)))
    xp = xp.reshape(n, (h + 2) * w, c)
    xp = jnp.pad(xp, ((0, 0), (8, 8), (0, 0)))
    rows = (h + 2) * w + 16

    bias = lw["b"].astype(jnp.float32).reshape(1, cout)

    in_specs = [
        pl.BlockSpec((1, rows, c), lambda b, i, j: (b, 0, 0)),   # resident
        pl.BlockSpec((9 * c, tn), lambda b, i, j: (0, j)),
        pl.BlockSpec((1, tn), lambda b, i, j: (0, j)),
    ]
    args = [xp, lw["w"].astype(jnp.bfloat16), bias]
    if fuse:
        up = fuse_up.astype(jnp.bfloat16).reshape(n, m, cout)
        gp = fuse_gp.astype(jnp.float32).reshape(n, 1, cout)
        in_specs += [
            pl.BlockSpec((1, tm, tn), lambda b, i, j: (b, i, j)),
            pl.BlockSpec((1, 1, tn), lambda b, i, j: (b, 0, j)),
        ]
        args += [up, gp]

    out = pl.pallas_call(
        functools.partial(_conv3x3_kernel, width=w, cin=c, tm=tm, relu=relu,
                          fuse_gau=fuse, roll_sign=sign),
        out_shape=jax.ShapeDtypeStruct((n, m, cout), jnp.bfloat16),
        grid_spec=pltpu.PrefetchScalarGridSpec(
            num_scalar_prefetch=0,
            grid=(n, m // tm, cout // tn),
            in_specs=in_specs,
            out_specs=pl.BlockSpec((1, tm, tn), lambda b, i, j: (b, i, j)),
            scratch_shapes=[pltpu.VMEM((tm, 9 * c), jnp.bfloat16)],
        ),
        compiler_params=pltpu.CompilerParams(
            dimension_semantics=("parallel", "parallel", "parallel"),
            vmem_limit_bytes=32 * 1024 * 1024),
    )(*args)
    return out.reshape(n, h, w, cout)


# --------------------------------------------------------------------------
# 1x1 conv as a single-K Pallas matmul (FPA mid branch).
# --------------------------------------------------------------------------

def _mm_kernel(a_ref, w_ref, b_ref, o_ref, *, relu):
    y = jnp.dot(a_ref[...], w_ref[...], preferred_element_type=jnp.float32)
    y = y + b_ref[...]
    if relu:
        y = jnp.maximum(y, 0.0)
    o_ref[...] = y.astype(o_ref.dtype)


def conv1x1_px(x, lw, relu):
    n, h, w, c = x.shape
    cout = lw["w"].shape[1]
    m = n * h * w
    tm = m
    while tm > 2048:
        tm //= 2
    tn = 256 if cout % 256 == 0 else (128 if cout % 128 == 0 else cout)
    if m // tm == 1 and cout // tn == 1 and tn >= 256:
        tn //= 2
    a = x.reshape(m, c).astype(jnp.bfloat16)
    bias = lw["b"].astype(jnp.float32).reshape(1, cout)
    out = pl.pallas_call(
        functools.partial(_mm_kernel, relu=relu),
        out_shape=jax.ShapeDtypeStruct((m, cout), jnp.bfloat16),
        grid_spec=pltpu.PrefetchScalarGridSpec(
            num_scalar_prefetch=0,
            grid=(m // tm, cout // tn),
            in_specs=[pl.BlockSpec((tm, c), lambda i, j: (i, 0)),
                      pl.BlockSpec((c, tn), lambda i, j: (0, j)),
                      pl.BlockSpec((1, tn), lambda i, j: (0, j))],
            out_specs=pl.BlockSpec((tm, tn), lambda i, j: (i, j)),
        ),
        compiler_params=pltpu.CompilerParams(
            dimension_semantics=("parallel", "parallel"),
            vmem_limit_bytes=32 * 1024 * 1024),
    )(a, lw["w"].astype(jnp.bfloat16), bias)
    return out.reshape(n, h, w, cout)


# --------------------------------------------------------------------------
# tiny / glue ops (plain JAX, XLA-fused)
# --------------------------------------------------------------------------

def conv_xla(x, lw, pad, relu):
    """tiny conv (cin<8, cout==1 or 1x1-spatial): plain XLA path."""
    y = jax.lax.conv_general_dilated(
        x.astype(jnp.float32), lw["w"], (1, 1), [(pad, pad), (pad, pad)],
        dimension_numbers=("NHWC", "HWIO", "NHWC"))
    y = y + lw["b"]
    return jnp.maximum(y, 0.0) if relu else y


def deconv_px(x, lw):
    """ConvTranspose2d(k=4,s=2,p=1,bias=False)+BN as one parity-packed 3x3 conv."""
    n, h, w, _ = x.shape
    cout = lw["w"].shape[1] // 4
    y = conv3x3_px(x, lw, relu=False)                     # (n, h, w, 4*cout)
    y = y.reshape(n, h, w, 2, 2, cout)
    y = jnp.transpose(y, (0, 1, 3, 2, 4, 5)).reshape(n, 2 * h, 2 * w, cout)
    return y


def maxpool2(x):
    n, h, w, c = x.shape
    return jnp.max(x.reshape(n, h // 2, 2, w // 2, 2, c), axis=(2, 4))


def global_avg_pool(x):
    return jnp.mean(x.astype(jnp.float32), axis=(1, 2), keepdims=True)


def bilinear_resize(x, oh, ow):
    """F.interpolate(mode='bilinear', align_corners=True), tiny tensors only."""
    n, h, w, c = x.shape

    def coords(out, inn):
        if inn == 1 or out == 1:
            src = jnp.zeros((out,), jnp.float32)
        else:
            src = jnp.arange(out, dtype=jnp.float32) * (inn - 1) / (out - 1)
        lo = jnp.floor(src).astype(jnp.int32)
        hi = jnp.minimum(lo + 1, inn - 1)
        return lo, hi, src - lo.astype(jnp.float32)

    y0, y1, wy = coords(oh, h)
    x0, x1, wx = coords(ow, w)
    rows = (x[:, y0] * (1.0 - wy)[None, :, None, None] +
            x[:, y1] * wy[None, :, None, None])
    out = (rows[:, :, x0] * (1.0 - wx)[None, None, :, None] +
           rows[:, :, x1] * wx[None, None, :, None])
    return out


# --------------------------------------------------------------------------
# FPA / GAU / PAN_Unet forward
# --------------------------------------------------------------------------

def fpa_forward(F, x):
    n, h, w, _ = x.shape
    b1 = global_avg_pool(x)
    b1 = conv_xla(b1, F["branch1"], 0, True)
    b1 = bilinear_resize(b1, h, w)
    mid = conv1x1_px(x, F["mid"], True)
    x1 = conv_xla(maxpool2(x), F["down1"], 3, True)
    x2 = conv_xla(maxpool2(x1), F["down2"], 2, True)
    x3 = conv_xla(maxpool2(x2), F["down3a"], 1, True)
    x3 = conv_xla(x3, F["down3b"], 1, True)
    x3 = bilinear_resize(x3, h // 4, w // 4)
    x2 = conv_xla(x2, F["conv2"], 2, True)
    y = x2 + x3
    y = bilinear_resize(y, h // 2, w // 2)
    x1 = conv_xla(x1, F["conv1"], 3, True)
    y = y + x1
    y = bilinear_resize(y, h, w)                          # (n, h, w, 1)
    out = y * mid.astype(jnp.float32) + b1                # tiny: plain JAX
    return out.astype(jnp.bfloat16)


def gau_forward(G, high, low):
    gp = global_avg_pool(high)
    gp = conv_xla(gp, G["conv1x1"], 0, True)              # (n,1,1,Cl) f32
    up = deconv_px(high, G["deconv"])                     # (n,2h,2w,Cl) bf16
    # relu(up + conv3x3(low)*gp) fused into the conv epilogue
    return conv3x3_px(low, G["conv3x3"], relu=True, fuse_up=up, fuse_gp=gp)


def pan_unet_forward(W, x_nchw):
    x = jnp.transpose(x_nchw, (0, 2, 3, 1))                    # NHWC
    x = conv_xla(x, W["conv1"], 1, True).astype(jnp.bfloat16)  # cin=5 -> XLA

    enc1 = conv3x3_px(x, W["conv2"], True)
    x = maxpool2(enc1)
    x = conv3x3_px(x, W["conv3"], True)
    enc2 = conv3x3_px(x, W["conv4"], True)
    x = maxpool2(enc2)
    x = conv3x3_px(x, W["conv5"], True)
    enc3 = conv3x3_px(x, W["conv6"], True)
    x = maxpool2(enc3)
    x = conv3x3_px(x, W["conv7"], True)
    enc4 = conv3x3_px(x, W["conv8"], True)
    x = maxpool2(enc4)
    x = conv3x3_px(x, W["convB1"], True)
    x = conv3x3_px(x, W["convB2"], True)

    x = fpa_forward(W["fpa"], x)                 # (n, H/16, W/16, 1024)
    x = gau_forward(W["gau1"], x, enc4)          # 256
    x = conv3x3_px(x, W["conv10"], True)
    x = gau_forward(W["gau2"], x, enc3)          # 128
    x = conv3x3_px(x, W["conv12"], True)
    x = gau_forward(W["gau3"], x, enc2)          # 64
    x = conv3x3_px(x, W["conv14"], True)
    x = gau_forward(W["gau4"], x, enc1)          # 32
    x = conv3x3_px(x, W["conv16"], True)
    out = conv_xla(x, W["convEND"], 0, False)    # 1x1, cout=1 -> XLA path
    return jnp.transpose(out, (0, 3, 1, 2)).astype(jnp.float32)


# --------------------------------------------------------------------------
# parameter folding (inference BN folded into conv weights/bias)
# --------------------------------------------------------------------------

def prepare_params(P, eps=1e-5):
    def fold(w, cb, bn):
        if bn is None:
            b = cb if cb is not None else jnp.zeros((w.shape[0],), jnp.float32)
            return w, b
        scale = bn["gamma"] * jax.lax.rsqrt(bn["var"] + eps)
        wf = w * scale[:, None, None, None]
        b0 = cb if cb is not None else 0.0
        return wf, (b0 - bn["mean"]) * scale + bn["beta"]

    def mx(w, cb, bn):                  # Pallas path: (kh*kw*cin, cout) bf16
        wf, bf = fold(w, cb, bn)
        cout, cin, kh, kw = wf.shape
        wm = jnp.transpose(wf, (2, 3, 1, 0)).reshape(kh * kw * cin, cout)
        return {"w": wm.astype(jnp.bfloat16), "b": bf.astype(jnp.float32)}

    def hwio(w, cb, bn):                # XLA path (tiny convs)
        wf, bf = fold(w, cb, bn)
        return {"w": jnp.transpose(wf, (2, 3, 1, 0)).astype(jnp.float32),
                "b": bf.astype(jnp.float32)}

    def deconv(wt, bn):                 # convT(4,2,1)+BN -> 3x3 parity conv
        cin, cout = wt.shape[0], wt.shape[1]
        scale = bn["gamma"] * jax.lax.rsqrt(bn["var"] + eps)
        shift = bn["beta"] - bn["mean"] * scale
        wts = wt * scale[None, :, None, None]
        zero = jnp.zeros((cin, cout), wts.dtype)
        taps = []
        for ty in range(3):
            for tx in range(3):
                per = []
                for py in range(2):
                    for px in range(2):
                        dy, dx = ty - py, tx - px
                        if dy in (0, 1) and dx in (0, 1):
                            per.append(wts[:, :, 3 - py - 2 * dy,
                                           3 - px - 2 * dx])
                        else:
                            per.append(zero)
                taps.append(jnp.stack(per, axis=1))       # (cin, 4, cout)
        wm = jnp.stack(taps, axis=0).reshape(9 * cin, 4 * cout)
        return {"w": wm.astype(jnp.bfloat16),
                "b": jnp.tile(shift, 4).astype(jnp.float32)}

    W = {"conv1": hwio(P["conv1"]["w"], P["conv1"]["b"], P["norm1"])}
    for name in ["conv2", "conv3", "conv4", "conv5", "conv6", "conv7",
                 "conv8", "convB1", "convB2", "conv10", "conv12", "conv14",
                 "conv16"]:
        W[name] = mx(P[name]["w"], P[name]["b"], P["norm" + name[4:]])
    W["convEND"] = hwio(P["convEND"]["w"], P["convEND"]["b"], None)

    f = P["fpa"]
    W["fpa"] = {
        "branch1": hwio(f["branch1"]["conv"]["w"], f["branch1"]["conv"]["b"],
                        f["branch1"]["bn"]),
        "mid": mx(f["mid"]["conv"]["w"], f["mid"]["conv"]["b"], f["mid"]["bn"]),
    }
    for k in ["down1", "down2", "down3a", "down3b", "conv2", "conv1"]:
        W["fpa"][k] = hwio(f[k]["conv"]["w"], f[k]["conv"]["b"], f[k]["bn"])

    for gname in ["gau1", "gau2", "gau3", "gau4"]:
        g = P[gname]
        W[gname] = {
            "conv1x1": hwio(g["conv1x1"]["w"], None, g["bn_high"]),
            "conv3x3": mx(g["conv3x3"]["w"], None, g["bn_low"]),
            "deconv": deconv(g["convT"], g["bn_up"]),
        }
    return W


# --------------------------------------------------------------------------
# deterministic parameters
# --------------------------------------------------------------------------

class _KeyGen:
    def __init__(self, seed=0):
        self._k = jax.random.PRNGKey(seed)
        self._i = 0

    def __call__(self):
        self._i += 1
        return jax.random.fold_in(self._k, self._i)


def build_params():
    kg = _KeyGen(0)

    def conv_w(cout, cin, kh, kw):
        std = (2.0 / (cin * kh * kw)) ** 0.5
        return std * jax.random.normal(kg(), (cout, cin, kh, kw), jnp.float32)

    def conv_p(cout, cin, k, bias):
        p = {"w": conv_w(cout, cin, k, k)}
        p["b"] = (0.05 * jax.random.normal(kg(), (cout,), jnp.float32)
                  if bias else None)
        return p

    def bn_p(c):
        return {
            "gamma": 1.0 + 0.05 * jax.random.normal(kg(), (c,), jnp.float32),
            "beta": 0.05 * jax.random.normal(kg(), (c,), jnp.float32),
            "mean": 0.05 * jax.random.normal(kg(), (c,), jnp.float32),
            "var": 1.0 + 0.1 * jax.random.uniform(kg(), (c,), jnp.float32),
        }

    def cbr_p(cout, cin, k):
        return {"conv": conv_p(cout, cin, k, bias=True), "bn": bn_p(cout)}

    def gau_p(ch_high, ch_low):
        std_t = (2.0 / (ch_high * 16)) ** 0.5
        return {
            "conv1x1": {"w": conv_w(ch_low, ch_high, 1, 1), "b": None},
            "bn_high": bn_p(ch_low),
            "conv3x3": {"w": conv_w(ch_low, ch_low, 3, 3), "b": None},
            "bn_low": bn_p(ch_low),
            "convT": std_t * jax.random.normal(kg(), (ch_high, ch_low, 4, 4),
                                               jnp.float32),
            "bn_up": bn_p(ch_low),
        }

    P = {}
    for name, cout, cin in [
        ("conv1", 32, 5), ("conv2", 32, 32), ("conv3", 64, 32), ("conv4", 64, 64),
        ("conv5", 128, 64), ("conv6", 128, 128), ("conv7", 256, 128),
        ("conv8", 256, 256), ("convB1", 512, 256), ("convB2", 512, 512),
        ("conv10", 256, 256), ("conv12", 128, 128), ("conv14", 64, 64),
        ("conv16", 32, 32),
    ]:
        P[name] = conv_p(cout, cin, 3, bias=False)
        P["norm" + name[4:]] = bn_p(cout)

    # FPA(512, 1024)
    P["fpa"] = {
        "branch1": cbr_p(1024, 512, 1),
        "mid":     cbr_p(1024, 512, 1),
        "down1":   cbr_p(1, 512, 7),
        "down2":   cbr_p(1, 1, 5),
        "down3a":  cbr_p(1, 1, 3),
        "down3b":  cbr_p(1, 1, 3),
        "conv2":   cbr_p(1, 1, 5),
        "conv1":   cbr_p(1, 1, 7),
    }

    # GAU blocks (gau1 wired for FPA's actual 1024-channel output)
    P["gau1"] = gau_p(1024, 256)
    P["gau2"] = gau_p(256, 128)
    P["gau3"] = gau_p(128, 64)
    P["gau4"] = gau_p(64, 32)

    P["convEND"] = conv_p(1, 32, 1, bias=True)

    # NOTE: upconv1..4 / conv9,11,13,15 / norm9,11,13,15 / dropout are defined
    # in the PyTorch __init__ but never used in forward(); they are omitted.
    return P


# --------------------------------------------------------------------------
# main
# --------------------------------------------------------------------------

if __name__ == "__main__":
    _roll_sign()                   # probe pltpu.roll direction once (cached)

    P = build_params()
    W = prepare_params(P)          # BN folded + MXU-ready weights (runs once)

    # Input: NCHW, 5 channels; spatial must be a multiple of 128 so the FPA
    # block (3 internal 2x maxpools on the /16 bottleneck) is valid.
    x = jax.random.normal(jax.random.PRNGKey(0), (1, 5, 128, 128), jnp.float32)

    fwd = jax.jit(pan_unet_forward)
    out = jax.block_until_ready(fwd(W, x))

    assert out.shape == (1, 1, 128, 128), out.shape
    assert bool(jnp.all(jnp.isfinite(out)))
    print("KERNEL_OK")
</pallas_src>

<mosaic_0001>
module attributes {stable_mosaic.version = 11 : i64} {
  func.func @probe(%arg0: memref<8x128xf32, #tpu.memory_space<vmem>>, %arg1: memref<8x128xf32, #tpu.memory_space<vmem>>) attributes {dimension_semantics = [], scalar_prefetch = 0 : i64, scratch_operands = 0 : i64, tpu.core_type = #tpu.core_type<tc>} {
    %c0 = arith.constant 0 : index
    %c0_0 = arith.constant 0 : index
    %0 = vector.load %arg0[%c0, %c0_0] : memref<8x128xf32, #tpu.memory_space<vmem>>, vector<8x128xf32>
    %c1_i32 = arith.constant 1 : i32
    %1 = tpu.dynamic_rotate %0 by %c1_i32 dim 0 : vector<8x128xf32>, i32 -> vector<8x128xf32>
    %c0_1 = arith.constant 0 : index
    %c0_2 = arith.constant 0 : index
    %2 = vector.load %arg1[%c0_1, %c0_2] : memref<8x128xf32, #tpu.memory_space<vmem>>, vector<8x128xf32>
    tpu.vector_store %arg1[%c0_1, %c0_2], %1 {strides = array<i32>} : memref<8x128xf32, #tpu.memory_space<vmem>>, vector<8x128xf32>,
    return
  }
}

</mosaic_0001>

<llo_original>
// kernel: tpu_custom_call.1
$region0: #{tpu_custom_call.1}
  #allocation0 [shape = 'u32[]', space=smem, size = 0x4, offset = 0x4, fixed_abs, tag = 'smem constant byte address 0x4 - core index']
  #allocation1 [shape = 'u32[144,128]{1,0:T(1,128)}', space=vmem, size = 0x12000, scoped, tag = 'internal scratch']
  %s0 = inlined_call_operand.hbm [shape: f32[8,128], index: 0, kind: input, shape index: {}]
  %s1 = inlined_call_operand.hbm [shape: f32[8,128], index: 1, kind: output, shape index: {}]
  %s2 = sld [smem:[#allocation0]]
  $region18: #{tpu_custom_call.1} parent=0
    _
  %s4 = ssub.s32 1, %s2
  %s5 = scalar_select 0, %s4, %s2
  $region1: #{tpu_custom_call.1} parent=0
    #allocation2 [shape = 'u8[4096]{0}', space=vmem, size = 0x1000, scoped, tag = 'input window, operand 0, single buffered']
    #allocation3 [shape = 's32[1]{0}', space=sflag, size = 0x4, scoped, tag = 'scoped memory for tpu_custom_call.1']
    #allocation4 [shape = 's32[1]{0}', space=sflag, size = 0x4, scoped, tag = 'scoped memory for tpu_custom_call.1']
    #allocation5 [shape = 'u8[4096]{0}', space=vmem, size = 0x1000, scoped, tag = 'output window, operand 0, single buffered']
    %6 = vsyncpa [#allocation3], 0
    %7 = vsyncpa [#allocation4], 0
    // Predicated region
    $region2: #{tpu_custom_call.1} parent=1 // pred_check
      _
    $region3: #{tpu_custom_call.1} parent=1 // pred_check_branch
      %9 = sbr.rel (0) target = $region5
    $region4: #{tpu_custom_call.1} parent=1 // pred_region
      %s11 = ssub.s32 128, 128
      %12 = vsyncadd [#allocation3], %s11
      %s14 = sshll.u32 [#allocation2], 4
      %s15 = int_to_ptr.vmem [resolvable:$true] %s14
      %17 = dma.hbm_to_vmem [thread:$0]  %s0, 128, %s15, [#allocation3]
    $region5: #{tpu_custom_call.1} parent=1 // pred_fallthru
      _
    // Predicated region
    $region6: #{tpu_custom_call.1} parent=1 // pred_check
      _
    $region7: #{tpu_custom_call.1} parent=1 // pred_check_branch
      %19 = sbr.rel (0) target = $region9
    $region8: #{tpu_custom_call.1} parent=1 // pred_region
      %20 = dma.done [#allocation3], 128
    $region9: #{tpu_custom_call.1} parent=1 // pred_fallthru
      _
    %v21 = vld [vmem:[#allocation2] sm:$0xff]
    %v22 = vrot.slane %v21, 7
    %23 = vst [vmem:[#allocation5] sm:$0xff] %v22
    // Predicated region
    $region10: #{tpu_custom_call.1} parent=1 // pred_check
      _
    $region11: #{tpu_custom_call.1} parent=1 // pred_check_branch
      %25 = sbr.rel (0) target = $region13
    $region12: #{tpu_custom_call.1} parent=1 // pred_region
      %s27 = ssub.s32 128, 128
      %28 = vsyncadd [#allocation4], %s27
      %s30 = sshll.u32 [#allocation5], 4
      %s31 = int_to_ptr.vmem [resolvable:$true] %s30
      %33 = dma.vmem_to_hbm [thread:$0]  %s31, 128, %s1, [#allocation4]
    $region13: #{tpu_custom_call.1} parent=1 // pred_fallthru
      _
    // Predicated region
    $region14: #{tpu_custom_call.1} parent=1 // pred_check
      _
    $region15: #{tpu_custom_call.1} parent=1 // pred_check_branch
      %35 = sbr.rel (0) target = $region17
    $region16: #{tpu_custom_call.1} parent=1 // pred_region
      %36 = dma.done [#allocation4], 128
    $region17: #{tpu_custom_call.1} parent=1 // pred_fallthru
      _
    %37 = vsyncpa [#allocation3], 1
    %38 = vsyncpa [#allocation4], 1

</llo_original>
